<compile_context>
chip_gen: v5e
topology: v5e:2x2
jax: 0.10.0
libtpu: 0.0.40
codegen_flags: <defaults>
</compile_context>

<pallas_src>
import numpy as np
import jax
import jax.numpy as jnp
from jax.experimental import pallas as pl
from jax.experimental.pallas import tpu as pltpu

_LOG_2PI = float(np.log(2.0 * np.pi))
_LANE = 128
_Z_BLOCK_BUDGET = 8 * 1024 * 1024       # double-buffered z block budget (bytes)
_MW_RESIDENT_BUDGET = 8 * 1024 * 1024   # mean + w, 2 pipeline buffers each (bytes)
_VMEM_LIMIT = 32 * 1024 * 1024          # safe on v5e/v6e (128 MiB) and v7x (64 MiB)


def _make_sq_dist_kernel(resident: bool, needs_row_mask: bool, rows: int, s_tile: int):
    """Accumulates sum_r (z - mean)^2 * w into a lane-wide (TB, 1, 128) partial."""

    def kernel(z_ref, m_ref, w_ref, o_ref):
        k = pl.program_id(1)

        @pl.when(k == 0)
        def _():
            o_ref[...] = jnp.zeros_like(o_ref)

        if resident:
            # mean / w live fully in VMEM (fetched once for the whole kernel);
            # slice out the k-th reduction tile.
            start = pl.multiple_of(k * s_tile, s_tile)
            m = m_ref[pl.ds(start, s_tile), :]
            w = w_ref[pl.ds(start, s_tile), :]
        else:
            m = m_ref[...]
            w = w_ref[...]

        z = z_ref[...].astype(jnp.float32)              # (TB, S, 128), cast in-kernel
        d = z - m[None]
        contrib = d * d * w[None]
        if needs_row_mask:
            # Ragged last reduction tile: z rows >= `rows` are unspecified and
            # must never reach the accumulator (jnp.where also kills NaN/Inf).
            rid = jax.lax.broadcasted_iota(jnp.int32, contrib.shape, 1) + k * s_tile
            contrib = jnp.where(rid < rows, contrib, 0.0)
        o_ref[...] += jnp.sum(contrib, axis=1, keepdims=True)

    return kernel


def _sq_dist_pallas(z3, m2, w2, *, tb_target=8, s_target=1024):
    """partial[b] (lane-wide) = sum_r (z3[b,r,:] - m2[r,:])^2 * w2[r,:]."""
    B, R, _ = z3.shape
    itemsize = z3.dtype.itemsize

    # ---- batch tile: keep >= 2 blocks on the "parallel" axis when B >= 2 ----
    TB = max(1, min(tb_target, pl.cdiv(B, 2), B))
    # TODO(synk): for B == 1 the batch axis has a single block; splitting the
    # reduction axis into 2 parallel halves would be needed to fill both v7x TCs.

    # ---- sublane tile: large (roofline) but bounded for 64-MiB-VMEM parts ----
    S = min(s_target, R)
    if S < R and S % 8 != 0:
        S = max(8, (S // 8) * 8)
    while S > 8 and 2 * TB * S * _LANE * itemsize > _Z_BLOCK_BUDGET:
        S = max(8, ((S // 2) // 8) * 8)
    KT = pl.cdiv(R, S)
    needs_row_mask = (R % S) != 0

    # ---- mean / w: VMEM-resident if small, else streamed per k-tile --------
    R_pad = KT * S
    if R_pad != R:          # tiny (D-sized) pad of mean/w only; z is never padded
        m2 = jnp.pad(m2, ((0, R_pad - R), (0, 0)))
        w2 = jnp.pad(w2, ((0, R_pad - R), (0, 0)))
    # 2 arrays x 2 pipeline buffers x R_pad*128*4 bytes must fit the budget.
    resident = (4 * R_pad * _LANE * 4) <= _MW_RESIDENT_BUDGET

    if resident:
        mw_spec = pl.BlockSpec((R_pad, _LANE), lambda bb, k: (0, 0))
        mw_bytes = 2 * R_pad * _LANE * 4                       # fetched once total
    else:
        mw_spec = pl.BlockSpec((S, _LANE), lambda bb, k: (k, 0))
        mw_bytes = 2 * R_pad * _LANE * 4 * pl.cdiv(B, TB)      # once per batch block

    cost = pl.CostEstimate(
        flops=4 * B * R * _LANE,
        transcendentals=0,
        bytes_accessed=B * R * _LANE * itemsize + mw_bytes + B * _LANE * 4,
    )

    kernel = _make_sq_dist_kernel(resident, needs_row_mask, R, S)

    partial = pl.pallas_call(
        kernel,
        out_shape=jax.ShapeDtypeStruct((B, 1, _LANE), jnp.float32),
        grid_spec=pltpu.PrefetchScalarGridSpec(
            num_scalar_prefetch=0,
            grid=(pl.cdiv(B, TB), KT),
            in_specs=[
                pl.BlockSpec((TB, S, _LANE), lambda bb, k: (bb, k, 0)),
                mw_spec,
                mw_spec,
            ],
            out_specs=pl.BlockSpec((TB, 1, _LANE), lambda bb, k: (bb, 0, 0)),
        ),
        compiler_params=pltpu.CompilerParams(
            dimension_semantics=("parallel", "arbitrary"),
            vmem_limit_bytes=_VMEM_LIMIT),
        cost_estimate=cost,
    )(z3, m2, w2)

    return jnp.sum(partial.reshape(B, _LANE), axis=1)


def split_gaussian_prior_logp(z, mean, log_var, *, tb_target=8, s_target=1024):
    """logp[b] = -0.5 * sum_d (z[b,d]-mean[d])^2 * exp(-log_var[d])
                 -0.5 * D * log(2*pi) - 0.5 * sum_d log_var[d]."""
    B = z.shape[0]
    D = int(np.prod(z.shape[1:]))

    zf = z.reshape(B, D)                              # native dtype, free reshape
    mf = mean.reshape(D).astype(jnp.float32)
    lvf = log_var.reshape(D).astype(jnp.float32)
    lv_sum = jnp.sum(lvf)                             # tiny, hoisted out of kernel
    wf = jnp.exp(-lvf)                                # precision weights, hoisted

    R = D // _LANE
    D_main = R * _LANE

    # <128-feature tail handled in the wrapper: avoids a full jnp.pad copy of z.
    if D_main < D:
        zt = zf[:, D_main:].astype(jnp.float32)
        tail_sq = jnp.sum((zt - mf[None, D_main:]) ** 2 * wf[None, D_main:], axis=1)
    else:
        tail_sq = jnp.zeros((B,), jnp.float32)

    if R > 0:
        z3 = zf[:, :D_main].reshape(B, R, _LANE)      # no-op when D is lane-aligned
        m2 = mf[:D_main].reshape(R, _LANE)
        w2 = wf[:D_main].reshape(R, _LANE)
        sq = _sq_dist_pallas(z3, m2, w2, tb_target=tb_target, s_target=s_target) + tail_sq
    else:
        sq = tail_sq

    const = -0.5 * D * _LOG_2PI - 0.5 * lv_sum
    return -0.5 * sq + const


class SplitGaussianPriorPallas:
    """JAX/Pallas re-implementation of SplitGaussianPrior.forward."""

    def __init__(self, temperature: float = 1.0):
        self.temp = temperature        # only used in reverse/sample (not ported)
        self.shape = None
        self.mean = None
        self.log_var = None

    def _flow_forward(self, x, cond=None):
        # TODO(synk): FlowModule is an injected dependency with no definition here;
        # use the identity flow (logdet = 0), matching an un-parameterized flow.
        return x, jnp.zeros((x.shape[0],), jnp.float32)

    @staticmethod
    def _split(x):
        # Split() — standard channel split into two halves (NCHW, dim=1).
        C = x.shape[1]
        return x[:, :C // 2], x[:, C // 2:]

    def _initialize(self, z):
        self.shape = list(z.shape[1:])
        # Mirrors torch.zeros_like(x[0]) buffer init.
        self.mean = jnp.zeros(tuple(z.shape[1:]), jnp.float32)
        self.log_var = jnp.zeros(tuple(z.shape[1:]), jnp.float32)

    def forward(self, x, cond=None):
        x, logdet = self._flow_forward(x, cond=cond)
        x1, z = self._split(x)
        if self.shape is None:
            self._initialize(z)
        logp = split_gaussian_prior_logp(z, self.mean, self.log_var)
        return x1, z, logp + logdet


def _reference_logp(z, mean, log_var, logdet):
    B = z.shape[0]
    m = (z - mean[None]) * jnp.sqrt(jnp.exp(-log_var[None]))
    D = float(np.prod(z.shape[1:]))
    logp = (-0.5 * jnp.sum(m.reshape(B, -1) ** 2, axis=1)
            - 0.5 * D * _LOG_2PI
            - 0.5 * jnp.sum(log_var))
    return logp + logdet


if __name__ == "__main__":
    key = jax.random.PRNGKey(0)
    B, C, H, W = 2, 4, 16, 16
    x = jax.random.normal(key, (B, C, H, W), dtype=jnp.float32)

    prior = SplitGaussianPriorPallas(temperature=1.0)
    x1, z, ll = prior.forward(x)
    jax.block_until_ready((x1, z, ll))

    # Sanity check against a pure-JAX reference.
    ll_ref = _reference_logp(z, prior.mean, prior.log_var,
                             jnp.zeros((B,), jnp.float32))
    np.testing.assert_allclose(np.asarray(ll), np.asarray(ll_ref),
                               rtol=1e-5, atol=1e-4)
    assert x1.shape == (B, C // 2, H, W)
    assert z.shape == (B, C // 2, H, W)
    assert ll.shape == (B,)

    print("KERNEL_OK")
</pallas_src>

<mosaic_0001>
module attributes {stable_mosaic.version = 11 : i64} {
  func.func @kernel(%arg0: i32, %arg1: i32, %arg2: memref<1x4x128xf32, #tpu.memory_space<vmem>>, %arg3: memref<4x128xf32, #tpu.memory_space<vmem>>, %arg4: memref<4x128xf32, #tpu.memory_space<vmem>>, %arg5: memref<1x1x128xf32, #tpu.memory_space<vmem>>) attributes {dimension_semantics = [#tpu.dimension_semantics<parallel>, #tpu.dimension_semantics<arbitrary>], iteration_bounds = array<i64: 2, 1>, scalar_prefetch = 0 : i64, scratch_operands = 0 : i64, tpu.core_type = #tpu.core_type<tc>, window_params = [{transform_indices = @transform_0, window_bounds = array<i64: 1, 4, 128>}, {pipeline_mode = #tpu.pipeline_mode<synchronous>, transform_indices = @transform_1, window_bounds = array<i64: 4, 128>}, {pipeline_mode = #tpu.pipeline_mode<synchronous>, transform_indices = @transform_2, window_bounds = array<i64: 4, 128>}, {transform_indices = @transform_3, window_bounds = array<i64: 1, 1, 128>}]} {
    %c0_i32 = arith.constant 0 : i32
    %0 = arith.cmpi eq, %arg1, %c0_i32 : i32
    %1 = arith.extui %0 : i1 to i32
    %c0_i32_0 = arith.constant 0 : i32
    %2 = arith.cmpi ne, %1, %c0_i32_0 : i32
    scf.if %2 {
      %cst_11 = arith.constant 0.000000e+00 : f32
      %20 = vector.broadcast %cst_11 : f32 to vector<1x1x128xf32>
      %c0_12 = arith.constant 0 : index
      %c0_13 = arith.constant 0 : index
      %c0_14 = arith.constant 0 : index
      %21 = vector.load %arg5[%c0_12, %c0_13, %c0_14] : memref<1x1x128xf32, #tpu.memory_space<vmem>>, vector<1x1x128xf32>
      tpu.vector_store %arg5[%c0_12, %c0_13, %c0_14], %20 {strides = array<i32>} : memref<1x1x128xf32, #tpu.memory_space<vmem>>, vector<1x1x128xf32>,
    } else {
    }
    %c4_i32 = arith.constant 4 : i32
    %3 = arith.muli %arg1, %c4_i32 : i32
    %4 = tpu.assume_multiple %3, 4 : i32
    %5 = arith.index_cast %4 : i32 to index
    %c0 = arith.constant 0 : index
    %6 = vector.load %arg3[%5, %c0] : memref<4x128xf32, #tpu.memory_space<vmem>>, vector<4x128xf32>
    %7 = arith.index_cast %4 : i32 to index
    %c0_1 = arith.constant 0 : index
    %8 = vector.load %arg4[%7, %c0_1] : memref<4x128xf32, #tpu.memory_space<vmem>>, vector<4x128xf32>
    %c0_2 = arith.constant 0 : index
    %c0_3 = arith.constant 0 : index
    %c0_4 = arith.constant 0 : index
    %9 = vector.load %arg2[%c0_2, %c0_3, %c0_4] : memref<1x4x128xf32, #tpu.memory_space<vmem>>, vector<1x4x128xf32>
    %10 = vector.shape_cast %6 : vector<4x128xf32> to vector<1x4x128xf32>
    %11 = arith.subf %9, %10 : vector<1x4x128xf32>
    %12 = arith.mulf %11, %11 : vector<1x4x128xf32>
    %13 = vector.shape_cast %8 : vector<4x128xf32> to vector<1x4x128xf32>
    %14 = arith.mulf %12, %13 : vector<1x4x128xf32>
    %c0_5 = arith.constant 0 : index
    %c0_6 = arith.constant 0 : index
    %c0_7 = arith.constant 0 : index
    %15 = vector.load %arg5[%c0_5, %c0_6, %c0_7] : memref<1x1x128xf32, #tpu.memory_space<vmem>>, vector<1x1x128xf32>
    %cst = arith.constant dense<0.000000e+00> : vector<1x128xf32>
    %16 = vector.multi_reduction <add>, %14, %cst [1] : vector<1x4x128xf32> to vector<1x128xf32>
    %17 = vector.shape_cast %16 : vector<1x128xf32> to vector<1x1x128xf32>
    %18 = arith.addf %15, %17 : vector<1x1x128xf32>
    %c0_8 = arith.constant 0 : index
    %c0_9 = arith.constant 0 : index
    %c0_10 = arith.constant 0 : index
    %19 = vector.load %arg5[%c0_8, %c0_9, %c0_10] : memref<1x1x128xf32, #tpu.memory_space<vmem>>, vector<1x1x128xf32>
    tpu.vector_store %arg5[%c0_8, %c0_9, %c0_10], %18 {strides = array<i32>} : memref<1x1x128xf32, #tpu.memory_space<vmem>>, vector<1x1x128xf32>,
    return
  }
  func.func @transform_0(%arg0: i32, %arg1: i32) -> (i32, i32, i32) {
    %c0_i32 = arith.constant 0 : i32
    %c0_i32_0 = arith.constant 0 : i32
    return %arg0, %arg1, %c0_i32 : i32, i32, i32
  }
  func.func @transform_1(%arg0: i32, %arg1: i32) -> (i32, i32) {
    %c0_i32 = arith.constant 0 : i32
    %c0_i32_0 = arith.constant 0 : i32
    %c0_i32_1 = arith.constant 0 : i32
    return %c0_i32, %c0_i32_0 : i32, i32
  }
  func.func @transform_2(%arg0: i32, %arg1: i32) -> (i32, i32) {
    %c0_i32 = arith.constant 0 : i32
    %c0_i32_0 = arith.constant 0 : i32
    %c0_i32_1 = arith.constant 0 : i32
    return %c0_i32, %c0_i32_0 : i32, i32
  }
  func.func @transform_3(%arg0: i32, %arg1: i32) -> (i32, i32, i32) {
    %c0_i32 = arith.constant 0 : i32
    %c0_i32_0 = arith.constant 0 : i32
    %c0_i32_1 = arith.constant 0 : i32
    return %arg0, %c0_i32, %c0_i32_0 : i32, i32, i32
  }
}

</mosaic_0001>

<llo_original>
// kernel: tpu_custom_call.1
$region0: #{tpu_custom_call.1}
  #allocation0 [shape = 'u32[]', space=smem, size = 0x4, offset = 0x4, fixed_abs, tag = 'smem constant byte address 0x4 - core index']
  #allocation1 [shape = 'u32[72,128]{1,0:T(1,128)}', space=vmem, size = 0x9000, scoped, tag = 'internal scratch']
  %s0 = inlined_call_operand.hbm [shape: f32[2,4,128], index: 0, kind: input, shape index: {}]
  %s1 = inlined_call_operand.hbm [shape: f32[4,128], index: 1, kind: input, shape index: {}]
  %s2 = inlined_call_operand.hbm [shape: f32[4,128], index: 2, kind: input, shape index: {}]
  %s3 = inlined_call_operand.hbm [shape: f32[2,1,128], index: 3, kind: output, shape index: {}]
  %s4 = sld [smem:[#allocation0]]
  $region61: #{tpu_custom_call.1} parent=0
    _
  %s6 = ssub.s32 1, %s4
  %s7 = scalar_select 0, %s6, %s4
  $region1: #{tpu_custom_call.1} parent=0
    #allocation2 [shape = 'u8[4096]{0}', space=vmem, size = 0x1000, scoped, tag = 'input window, operand 0']
    #allocation3 [shape = 's32[2]{0}', space=sflag, size = 0x8, scoped, tag = 'scoped memory for tpu_custom_call.1']
    #allocation4 [shape = 's32[2]{0}', space=sflag, size = 0x8, scoped, tag = 'scoped memory for tpu_custom_call.1']
    #allocation5 [shape = 'u8[2048]{0}', space=vmem, size = 0x800, scoped, tag = 'input window, operand 1, single buffered']
    #allocation6 [shape = 's32[1]{0}', space=sflag, size = 0x4, scoped, tag = 'scoped memory for tpu_custom_call.1']
    #allocation7 [shape = 'u8[2048]{0}', space=vmem, size = 0x800, scoped, tag = 'input window, operand 2, single buffered']
    #allocation8 [shape = 'u8[1024]{0}', space=vmem, size = 0x400, scoped, tag = 'output window, operand 0']
    %8 = vsyncpa [#allocation3], 0
    %s9 = scalar_lea.sflag [#allocation3], 1
    %10 = vsyncpa %s9, 0
    %11 = vsyncpa [#allocation6], 0
    %12 = vsyncpa [#allocation4], 0
    %s13 = scalar_lea.sflag [#allocation4], 1
    %14 = vsyncpa %s13, 0
    loop: start=0, step=1, limit=4
    $region2: #{tpu_custom_call.1} parent=1 // loop_pre_header
      _
    $region3: #{tpu_custom_call.1} parent=1 // loop_header
      %s16 = sphi 0, %s20
      %p17 = scmp.ge.s32.totalorder %s16, 4
      %s23 = sphi 0, %s35
      %s24 = sphi 0, %s31
      %s25 = sphi 0, %s23
      %s26 = sphi 0, %s24
      %s27 = sphi 0, %s25
      %s28 = sphi 0, %s26
      %s40 = sphi 0, %s42
      %s43 = sphi 0, %s40
      %s44 = sphi 0, %s43
      %s60 = sphi 0, %s44
      %s64 = sphi 0, %s64
      %s66 = sphi 0, %s64
      %s67 = sphi 0, %s66
      %s81 = sphi 0, %s67
      %s85 = sphi 0, %s85
      %s87 = sphi 0, %s85
      %s88 = sphi 0, %s87
      %s102 = sphi 0, %s88
      %s108 = sphi 0, %s110
      %s111 = sphi 0, %s108
      %s112 = sphi 0, %s111
      %s128 = sphi 0, %s112
    $region4: #{tpu_custom_call.1} parent=1 // loop_header_branch
      %19 = sbr.rel (%p17) target = $region8
    $region5: #{tpu_custom_call.1} parent=1 // loop_body
      %s21 = ssub.s32 %s16, 1
      %s22 = ssub.s32 %s16, 2
      %s29 = sadd.s32 1, %s24
      %p30 = scmp.ge.s32.totalorder %s29, 1
      %s31 = scalar_select %p30, 0, %s29
      %s32 = sadd.s32 1, %s23
      %s33 = scalar_select %p30, %s32, %s23
      %p34 = scmp.ge.s32.totalorder %s33, 2
      %s35 = scalar_select %p34, 0, %s33
      %s36 = ssub.s32 %s23, %s35
      %s37 = ssub.s32 %s24, %s31
      %s38 = sor.u32 %s36, %s37
      %p39 = scmp.eq.s32.totalorder %s38, 0
      %s41 = sadd.s32 %s40, 1
      %s42 = scalar_select %p39, %s40, %s41
      %p45 = pneg %p39
      %p46 = scmp.eq.s32.totalorder %s16, 1
      %p47 = por %p45, %p46
      %p48 = scmp.ne.s32.totalorder %s40, %s43
      %p49 = scmp.eq.s32.totalorder %s16, 0
      %p50 = por %p48, %p49
      %p51 = scmp.ne.s32.totalorder %s40, %s43
      %p52 = scmp.eq.s32.totalorder %s21, 1
      %p53 = por %p51, %p52
      %p54 = scmp.ne.s32.totalorder %s43, %s44
      %p55 = scmp.eq.s32.totalorder %s21, 0
      %p56 = por %p54, %p55
      %p57 = scmp.ne.s32.totalorder %s43, %s44
      %p58 = scmp.eq.s32.totalorder %s22, 1
      %p59 = por %p57, %p58
      %p61 = scmp.ne.s32.totalorder %s44, %s60
      %p62 = scmp.eq.s32.totalorder %s22, 0
      %p63 = por %p61, %p62
      %s65 = sadd.s32 %s64, 1
      %p68 = scmp.eq.s32.totalorder %s16, 1
      %p69 = scmp.ne.s32.totalorder %s64, %s66
      %p70 = scmp.eq.s32.totalorder %s16, 0
      %p71 = por %p69, %p70
      %p72 = scmp.ne.s32.totalorder %s64, %s66
      %p73 = scmp.eq.s32.totalorder %s21, 1
      %p74 = por %p72, %p73
      %p75 = scmp.ne.s32.totalorder %s66, %s67
      %p76 = scmp.eq.s32.totalorder %s21, 0
      %p77 = por %p75, %p76
      %p78 = scmp.ne.s32.totalorder %s66, %s67
      %p79 = scmp.eq.s32.totalorder %s22, 1
      %p80 = por %p78, %p79
      %p82 = scmp.ne.s32.totalorder %s67, %s81
      %p83 = scmp.eq.s32.totalorder %s22, 0
      %p84 = por %p82, %p83
      %s86 = sadd.s32 %s85, 1
      %p89 = scmp.eq.s32.totalorder %s16, 1
      %p90 = scmp.ne.s32.totalorder %s85, %s87
      %p91 = scmp.eq.s32.totalorder %s16, 0
      %p92 = por %p90, %p91
      %p93 = scmp.ne.s32.totalorder %s85, %s87
      %p94 = scmp.eq.s32.totalorder %s21, 1
      %p95 = por %p93, %p94
      %p96 = scmp.ne.s32.totalorder %s87, %s88
      %p97 = scmp.eq.s32.totalorder %s21, 0
      %p98 = por %p96, %p97
      %p99 = scmp.ne.s32.totalorder %s87, %s88
      %p100 = scmp.eq.s32.totalorder %s22, 1
      %p101 = por %p99, %p100
      %p103 = scmp.ne.s32.totalorder %s88, %s102
      %p104 = scmp.eq.s32.totalorder %s22, 0
      %p105 = por %p103, %p104
      %s106 = ssub.s32 %s23, %s35
      %p107 = scmp.eq.s32.totalorder %s106, 0
      %s109 = sadd.s32 %s108, 1
      %s110 = scalar_select %p107, %s108, %s109
      %p113 = pneg %p107
      %p114 = scmp.eq.s32.totalorder %s16, 1
      %p115 = por %p113, %p114
      %p116 = scmp.ne.s32.totalorder %s108, %s111
      %p117 = scmp.eq.s32.totalorder %s16, 0
      %p118 = por %p116, %p117
      %p119 = scmp.ne.s32.totalorder %s108, %s111
      %p120 = scmp.eq.s32.totalorder %s21, 1
      %p121 = por %p119, %p120
      %p122 = scmp.ne.s32.totalorder %s111, %s112
      %p123 = scmp.eq.s32.totalorder %s21, 0
      %p124 = por %p122, %p123
      %p125 = scmp.ne.s32.totalorder %s111, %s112
      %p126 = scmp.eq.s32.totalorder %s22, 1
      %p127 = por %p125, %p126
      %p129 = scmp.ne.s32.totalorder %s112, %s128
      %p130 = scmp.eq.s32.totalorder %s22, 0
      %p131 = por %p129, %p130
      %p132 = scmp.le.s32.totalorder 1, %s16
      %p133 = scmp.lt.s32.totalorder %s16, 3
      %p134 = pnand %p132, %p133
      %p135 = pneg %p134
      // Predicated region
      $region9: #{tpu_custom_call.1} parent=5 // pred_check
        _
      $region10: #{tpu_custom_call.1} parent=5 // pred_check_branch
        %137 = sbr.rel (%p134) target = $region12
      $region11: #{tpu_custom_call.1} parent=5 // pred_region
        %s138 = ssub.s32 %s16, 1
        // Predicated region
        $region13: #{tpu_custom_call.1} parent=11 // pred_check
          %p139 = pneg %p77
        $region14: #{tpu_custom_call.1} parent=11 // pred_check_branch
          %141 = sbr.rel (%p139) target = $region16
        $region15: #{tpu_custom_call.1} parent=11 // pred_region
          %143 = vsyncadd [#allocation6], 0
          %s145 = sshll.u32 %s1, 4
          %s146 = int_to_ptr.hbm [resolvable:$true] %s145
          %s147 = sshll.u32 [#allocation5], 4
          %s148 = int_to_ptr.vmem [resolvable:$true] %s147
          %150 = dma.hbm_to_vmem [thread:$0]  %s146, 64, %s148, [#allocation6]
        $region16: #{tpu_custom_call.1} parent=11 // pred_fallthru
          _
        // Predicated region
        $region17: #{tpu_custom_call.1} parent=11 // pred_check
          %p151 = pneg %p98
        $region18: #{tpu_custom_call.1} parent=11 // pred_check_branch
          %153 = sbr.rel (%p151) target = $region20
        $region19: #{tpu_custom_call.1} parent=11 // pred_region
          %155 = vsyncadd [#allocation6], 0
          %s157 = sshll.u32 %s2, 4
          %s158 = int_to_ptr.hbm [resolvable:$true] %s157
          %s159 = sshll.u32 [#allocation7], 4
          %s160 = int_to_ptr.vmem [resolvable:$true] %s159
          %162 = dma.hbm_to_vmem [thread:$0]  %s158, 64, %s160, [#allocation6]
        $region20: #{tpu_custom_call.1} parent=11 // pred_fallthru
          _
      $region12: #{tpu_custom_call.1} parent=5 // pred_fallthru
        _
      %p163 = scmp.lt.s32.totalorder %s16, 2
      // Predicated region
      $region21: #{tpu_custom_call.1} parent=5 // pred_check
        %p164 = pneg %p163
      $region22: #{tpu_custom_call.1} parent=5 // pred_check_branch
        %166 = sbr.rel (%p164) target = $region24
      $region23: #{tpu_custom_call.1} parent=5 // pred_region
        // Predicated region
        $region25: #{tpu_custom_call.1} parent=23 // pred_check
          %p167 = pneg %p50
        $region26: #{tpu_custom_call.1} parent=23 // pred_check_branch
          %169 = sbr.rel (%p167) target = $region28
        $region27: #{tpu_custom_call.1} parent=23 // pred_region
          %s170 = sand.u32 %s40, 1
          %s171 = scalar_lea.sflag [#allocation3], %s170
          %s172 = sand.u32 %s40, 1
          %s173 = smul.addr %s172, 4
          %s174 = scalar_lea.vmem [#allocation2], %s173
          %176 = vsyncadd %s171, 0
          %s177 = sadd.s32 %s24, %s23
          %s178 = smul.addr %s177, 4
          %s179 = scalar_lea.hbm %s0, %s178
          %s181 = sshll.u32 %s179, 4
          %s182 = int_to_ptr.hbm [resolvable:$true] %s181
          %s183 = sshll.u32 %s174, 4
          %s184 = int_to_ptr.vmem [resolvable:$true] %s183
          %186 = dma.hbm_to_vmem [thread:$0]  %s182, 64, %s184, %s171
        $region28: #{tpu_custom_call.1} parent=23 // pred_fallthru
          _
      $region24: #{tpu_custom_call.1} parent=5 // pred_fallthru
        _
      %p187 = scmp.le.s32.totalorder 1, %s16
      %p188 = scmp.lt.s32.totalorder %s16, 3
      %p189 = pnand %p187, %p188
      %p190 = pneg %p189
      // Predicated region
      $region29: #{tpu_custom_call.1} parent=5 // pred_check
        _
      $region30: #{tpu_custom_call.1} parent=5 // pred_check_branch
        %192 = sbr.rel (%p189) target = $region32
      $region31: #{tpu_custom_call.1} parent=5 // pred_region
        %s193 = ssub.s32 %s16, 1
        %s194 = sand.u32 %s43, 1
        %s195 = scalar_lea.sflag [#allocation3], %s194
        %s196 = sand.u32 %s43, 1
        %s197 = smul.addr %s196, 4
        %s198 = scalar_lea.vmem [#allocation2], %s197
        // Predicated region
        $region33: #{tpu_custom_call.1} parent=31 // pred_check
          %p199 = pneg %p56
        $region34: #{tpu_custom_call.1} parent=31 // pred_check_branch
          %201 = sbr.rel (%p199) target = $region36
        $region35: #{tpu_custom_call.1} parent=31 // pred_region
          %203 = dma.done %s195, 64
        $region36: #{tpu_custom_call.1} parent=31 // pred_fallthru
          _
        // Predicated region
        $region37: #{tpu_custom_call.1} parent=31 // pred_check
          %p204 = pneg %p77
        $region38: #{tpu_custom_call.1} parent=31 // pred_check_branch
          %206 = sbr.rel (%p204) target = $region40
        $region39: #{tpu_custom_call.1} parent=31 // pred_region
          %208 = dma.done [#allocation6], 64
        $region40: #{tpu_custom_call.1} parent=31 // pred_fallthru
          _
        // Predicated region
        $region41: #{tpu_custom_call.1} parent=31 // pred_check
          %p209 = pneg %p98
        $region42: #{tpu_custom_call.1} parent=31 // pred_check_branch
          %211 = sbr.rel (%p209) target = $region44
        $region43: #{tpu_custom_call.1} parent=31 // pred_region
          %213 = dma.done [#allocation6], 64
        $region44: #{tpu_custom_call.1} parent=31 // pred_fallthru
          _
        %s214 = sand.u32 %s43, 1
        %s215 = scalar_lea.sflag [#allocation3], %s214
        %s216 = sand.u32 %s43, 1
        %s217 = smul.addr %s216, 4
        %s218 = scalar_lea.vmem [#allocation2], %s217
        %p219 = pneg %p56
        %p220 = pneg %p53
        %p221 = pneg %p77
        %p222 = pneg %p74
        %p223 = pneg %p98
        %p224 = pneg %p95
        %p225 = pneg %p124
        %p226 = pneg %p121
        %s227 = sand.u32 %s111, 1
        %s228 = scalar_lea.sflag [#allocation4], %s227
        %s229 = sand.u32 %s111, 1
        %s230 = scalar_lea.vmem [#allocation8], %s229
        %p231 = scmp.eq.s32.totalorder %s26, 0
        // Predicated region
        $region45: #{tpu_custom_call.1} parent=31 // pred_check
          %p232 = pneg %p231
        $region46: #{tpu_custom_call.1} parent=31 // pred_check_branch
          %234 = sbr.rel (%p232) target = $region48
        $region47: #{tpu_custom_call.1} parent=31 // pred_region
          %235 = vst [vmem:[%s230] sm:$0x1] 0.0
        $region48: #{tpu_custom_call.1} parent=31 // pred_fallthru
          _
        %s236 = smul.u32 %s26, 4
        %s237 = scalar_lea.vmem [#allocation5], %s236
        %v238 = vld [vmem:[%s237] sm:$0xf]
        %s239 = scalar_lea.vmem [#allocation7], %s236
        %v240 = vld [vmem:[%s239] sm:$0xf]
        %v241 = vld [vmem:[%s198] sm:$0xf]
        %v242 = vsub.f32 %v241, %v238
        %v243 = vmul.f32 %v242, %v242
        %v244 = vmul.f32 %v243, %v240
        %v245 = vld [vmem:[%s230] sm:$0x1]
        %vm246 = vcmask 1043456
        %v247 = vsel %vm246, %v244, 0.0
        %v248 = vrot.slane %v247, 4
        %v249 = vadd.f32 %v247, %v248
        %v250 = vrot.slane %v249, 2
        %v251 = vadd.f32 %v249, %v250
        %v252 = vrot.slane %v251, 1
        %v253 = vadd.f32 %v251, %v252
        %v254 = vadd.f32 %v245, %v253
        %255 = vst [vmem:[%s230] sm:$0x1] %v254
        %s256 = sand.u32 %s111, 1
        %s257 = scalar_lea.sflag [#allocation4], %s256
        %s258 = sand.u32 %s111, 1
        %s259 = scalar_lea.vmem [#allocation8], %s258
        // Predicated region
        $region49: #{tpu_custom_call.1} parent=31 // pred_check
          %p260 = pneg %p121
        $region50: #{tpu_custom_call.1} parent=31 // pred_check_branch
          %262 = sbr.rel (%p260) target = $region52
        $region51: #{tpu_custom_call.1} parent=31 // pred_region
          %264 = vsyncadd %s257, 0
          %s265 = scalar_lea.hbm %s3, %s25
          %s267 = sshll.u32 %s259, 4
          %s268 = int_to_ptr.vmem [resolvable:$true] %s267
          %s269 = sshll.u32 %s265, 4
          %s270 = int_to_ptr.hbm [resolvable:$true] %s269
          %272 = dma.vmem_to_hbm [thread:$0]  %s268, 16, %s270, %s257
        $region52: #{tpu_custom_call.1} parent=31 // pred_fallthru
          _
      $region32: #{tpu_custom_call.1} parent=5 // pred_fallthru
        _
      %p273 = scmp.le.s32.totalorder 2, %s16
      // Predicated region
      $region53: #{tpu_custom_call.1} parent=5 // pred_check
        %p274 = pneg %p273
      $region54: #{tpu_custom_call.1} parent=5 // pred_check_branch
        %276 = sbr.rel (%p274) target = $region56
      $region55: #{tpu_custom_call.1} parent=5 // pred_region
        %s277 = ssub.s32 %s16, 2
        // Predicated region
        $region57: #{tpu_custom_call.1} parent=55 // pred_check
          %p278 = pneg %p127
        $region58: #{tpu_custom_call.1} parent=55 // pred_check_branch
          %280 = sbr.rel (%p278) target = $region60
        $region59: #{tpu_custom_call.1} parent=55 // pred_region
          %s281 = sand.u32 %s112, 1
          %s282 = scalar_lea.sflag [#allocation4], %s281
          %s283 = sand.u32 %s112, 1
          %s284 = scalar_lea.vmem [#allocation8], %s283
          %286 = dma.done %s282, 16
        $region60: #{tpu_custom_call.1} parent=55 // pred_fallthru
          _
      $region56: #{tpu_custom_call.1} parent=5 // pred_fallthru
        _
    $region6: #{tpu_custom_call.1} parent=1 // loop_footer
      %s20 = sadd.s32 1, %s16
    $region7: #{tpu_custom_call.1} parent=1 // loop_footer_branch
      %15 = sbr.rel target = $region3
    $region8: #{tpu_custom_call.1} parent=1 // loop_exit
      _
    %287 = vsyncpa [#allocation3], 1
    %s288 = scalar_lea.sflag [#allocation3], 1
    %289 = vsyncpa %s288, 1
    %290 = vsyncpa [#allocation6], 1
    %291 = vsyncpa [#allocation4], 1
    %s292 = scalar_lea.sflag [#allocation4], 1
    %293 = vsyncpa %s292, 1

</llo_original>
